<compile_context>
chip_gen: v6e
topology: v6e:2x2x1
jax: 0.10.0
libtpu: 0.0.40
codegen_flags: <defaults>
</compile_context>

<pallas_src>
from functools import partial

import jax
import jax.numpy as jnp
from jax import lax
from jax.experimental import pallas as pl
from jax.experimental.pallas import tpu as pltpu

NUM_LIN = 5                       # linear segments (=> 4 thresholds)
LANE = 128
SUB = 8
MAX_BLOCK_ROWS = 4096             # (4096,128) f32 tile = 2 MiB
VMEM_LIMIT_BYTES = 48 * 1024 * 1024

# Packed coefficient layout: one flat f32 SMEM vector (28 words).
_OFF_ENC_THR = 0                               # 4 entries
_OFF_ENC_MUL = _OFF_ENC_THR + NUM_LIN - 1      # 5
_OFF_ENC_OFF = _OFF_ENC_MUL + NUM_LIN          # 5
_OFF_DEC_THR = _OFF_ENC_OFF + NUM_LIN          # 4
_OFF_DEC_MUL = _OFF_DEC_THR + NUM_LIN - 1      # 5
_OFF_DEC_OFF = _OFF_DEC_MUL + NUM_LIN          # 5
_COEF_LEN = _OFF_DEC_OFF + NUM_LIN             # 28

_CANON_OUTPUTS = ("code", "quant", "dequant")


# ----------------------------- kernel ---------------------------------------
def _make_mst_kernel(emit_code, emit_quant, emit_deq):
    """Build an MS_T kernel that stores only the requested outputs."""

    def kernel(coef_ref, x_ref, *out_refs):
        outs = list(out_refs)
        x = x_ref[...]
        ax = jnp.abs(x)
        # mysign: +1 for x == 0 (matches torch) -> one compare + one select.
        sgn = jnp.where(x < 0, -1.0, 1.0).astype(jnp.float32)

        # ---- encode: thresholds increase, so select the segment's (mul, off)
        # scalars with a top-down where-chain, then a single multiply+add.
        mul = coef_ref[_OFF_ENC_MUL + NUM_LIN - 1]
        off = coef_ref[_OFF_ENC_OFF + NUM_LIN - 1]
        for i in range(NUM_LIN - 2, -1, -1):
            lt = ax < coef_ref[_OFF_ENC_THR + i]
            mul = jnp.where(lt, coef_ref[_OFF_ENC_MUL + i], mul)
            off = jnp.where(lt, coef_ref[_OFF_ENC_OFF + i], off)
        res = ax * mul + off
        if emit_code:
            outs.pop(0)[...] = res * sgn

        if emit_quant or emit_deq:
            # round() is odd-symmetric: round(res*sgn) == round(res)*sgn.
            rres = jnp.round(res)
            if emit_quant:
                outs.pop(0)[...] = rres * sgn
            if emit_deq:
                dmul = coef_ref[_OFF_DEC_MUL + NUM_LIN - 1]
                doff = coef_ref[_OFF_DEC_OFF + NUM_LIN - 1]
                for i in range(NUM_LIN - 2, -1, -1):
                    lt = rres < coef_ref[_OFF_DEC_THR + i]
                    dmul = jnp.where(lt, coef_ref[_OFF_DEC_MUL + i], dmul)
                    doff = jnp.where(lt, coef_ref[_OFF_DEC_OFF + i], doff)
                outs.pop(0)[...] = (rres * dmul + doff) * sgn

    return kernel


# --------------------------- scalar setup -----------------------------------
def _minmax(flat):
    """Single-pass min+max (one variadic reduce => one HBM stream of x)."""
    def comp(acc, val):
        return (jnp.minimum(acc[0], val[0]), jnp.maximum(acc[1], val[1]))

    init = (jnp.asarray(jnp.inf, jnp.float32), jnp.asarray(-jnp.inf, jnp.float32))
    return lax.reduce((flat, flat), init, comp, (0,))


def _init_form(flat):
    """MS_T.init_form: scale=(max-min)/256 (x5), param_range=arange(1,5)*absmax/5."""
    xmin, xmax = _minmax(flat)
    scale = jnp.full((NUM_LIN,), (xmax - xmin) / 256.0, dtype=jnp.float32)
    absmax = jnp.maximum(jnp.abs(xmin), jnp.abs(xmax))          # == |x|.max()
    param_range = jnp.arange(1, NUM_LIN, dtype=jnp.float32) * (absmax / NUM_LIN)
    return scale, param_range


def _packed_coeffs(scale, param_range):
    """Hoist all scalar math out of the kernel and pack it into one SMEM vector.

    encode segment i: code = |x| * enc_mul[i] + enc_off[i]   if |x| < enc_thr[i]
    decode segment i: deq  = |q| * dec_mul[i] + dec_off[i]   if |q| < dec_thr[i]
    (segment NUM_LIN-1 is the thresholdless default)
    """
    zero = jnp.zeros((1,), jnp.float32)
    range_prev = jnp.concatenate([zero, param_range])                  # [5]
    seg_width = param_range - range_prev[:NUM_LIN - 1]                 # [4]

    inv_abs_scale = 1.0 / jnp.abs(scale)                               # [5]
    enc_base = jnp.concatenate(
        [zero, jnp.cumsum(seg_width * inv_abs_scale[:NUM_LIN - 1])])   # [5]
    enc_thr = param_range                                              # [4]
    enc_mul = inv_abs_scale
    enc_off = enc_base - range_prev * inv_abs_scale

    dec_thr = jnp.cumsum(seg_width / scale[:NUM_LIN - 1])              # [4]
    dec_base = jnp.concatenate([zero, dec_thr])                        # [5]
    dec_mul = scale
    dec_off = range_prev - dec_base * scale

    coef = jnp.concatenate([enc_thr, enc_mul, enc_off, dec_thr, dec_mul, dec_off])
    assert coef.shape == (_COEF_LEN,)
    return coef


# ----------------------------- wrapper ---------------------------------------
def _round_up(a, b):
    return -(-a // b) * b


@partial(jax.jit, static_argnames=("outputs",))
def ms_t_forward(x, outputs=_CANON_OUTPUTS):
    """MS_T.init_form(x); MS_T.forward(x).

    `outputs` (static tuple) selects which of ("code", "quant", "dequant") to
    compute and store; results are returned in canonical order. Using
    ("dequant",) halves HBM store traffic vs the full 3-output forward.
    """
    sel = tuple(name for name in _CANON_OUTPUTS if name in outputs)
    if not sel or len(sel) != len(set(outputs)):
        raise ValueError(f"outputs must be a non-empty subset of {_CANON_OUTPUTS}")

    x = x.astype(jnp.float32)
    orig_shape = x.shape
    flat = x.reshape(-1)
    n = flat.shape[0]

    scale, param_range = _init_form(flat)          # reductions on UNpadded data
    coef = _packed_coeffs(scale, param_range)

    # Lane-dense (rows, 128) layout. Pad only up to an (8, 128) sublane tile
    # (<= 1023 elems); aligned inputs take the zero-copy path.
    rows = _round_up(_round_up(n, LANE) // LANE, SUB)
    pad = rows * LANE - n
    if pad:
        flat = jnp.pad(flat, (0, pad))
    x2 = flat.reshape(rows, LANE)

    # Big blocks for the HBM roofline, but >= 2 grid steps whenever possible so
    # ("parallel",) can shard across v7x's two TensorCores. A ragged last block
    # (rows % block_rows != 0) is store-masked by Pallas.
    block_rows = max(SUB, min(MAX_BLOCK_ROWS, _round_up(-(-rows // 2), SUB)))
    grid = (pl.cdiv(rows, block_rows),)

    tile_spec = pl.BlockSpec((block_rows, LANE), lambda i: (i, 0))
    smem_spec = pl.BlockSpec(memory_space=pltpu.MemorySpace.SMEM)
    out_sds = jax.ShapeDtypeStruct((rows, LANE), jnp.float32)

    kernel = _make_mst_kernel("code" in sel, "quant" in sel, "dequant" in sel)
    n_out = len(sel)
    cost = pl.CostEstimate(
        flops=36 * rows * LANE,
        transcendentals=0,
        bytes_accessed=4 * rows * LANE * (1 + n_out),
    )

    outs = pl.pallas_call(
        kernel,
        out_shape=tuple(out_sds for _ in sel),
        grid=grid,
        in_specs=[smem_spec, tile_spec],
        out_specs=tuple(tile_spec for _ in sel),
        compiler_params=pltpu.CompilerParams(
            dimension_semantics=("parallel",),
            vmem_limit_bytes=VMEM_LIMIT_BYTES),
        cost_estimate=cost,
    )(coef, x2)

    def unflatten(y):
        if pad:
            return y.reshape(-1)[:n].reshape(orig_shape)
        return y.reshape(orig_shape)          # pure reshape, no slice copy

    # TODO(synk): optional narrow output dtypes (int8 quant / bf16 code) would
    # save a further ~5 B/elem of HBM stores, but change the returned dtypes
    # vs the torch module, so they are not enabled by default.
    return tuple(unflatten(y) for y in outs)


# ---------------- pure-JAX reference (mirrors the torch code) ----------------
def _mysign(x):
    return jnp.where(x == 0, jnp.ones_like(x), jnp.sign(x))


def ref_encode(x, scale, prange):
    sgn = _mysign(x)
    ax = jnp.abs(x)
    res = jnp.zeros_like(x)
    filled = jnp.zeros(x.shape, bool)
    base_last, range_last = 0.0, 0.0
    for i in range(NUM_LIN - 1):
        sc = jnp.abs(scale[i])
        mask = (ax < prange[i]) & (~filled)
        res = jnp.where(mask, base_last + (ax - range_last) / sc, res)
        filled = filled | mask
        base_last = base_last + (prange[i] - range_last) / sc
        range_last = prange[i]
    res = jnp.where(filled, res, base_last + (ax - range_last) / jnp.abs(scale[-1]))
    return res * sgn


def ref_decode(x, scale, prange):
    sgn = _mysign(x)
    ax = jnp.abs(x)
    res = jnp.zeros_like(x)
    filled = jnp.zeros(x.shape, bool)
    base_last, range_last = 0.0, 0.0
    for i in range(NUM_LIN - 1):
        base_now = base_last + (prange[i] - range_last) / scale[i]
        mask = (ax < base_now) & (~filled)
        res = jnp.where(mask, range_last + (ax - base_last) * scale[i], res)
        filled = filled | mask
        base_last = base_now
        range_last = prange[i]
    res = jnp.where(filled, res, range_last + (ax - base_last) * scale[-1])
    return res * sgn


if __name__ == "__main__":
    key = jax.random.PRNGKey(0)
    x = jax.random.normal(key, (2, 4, 16, 16), dtype=jnp.float32)

    code, quant, dequant = ms_t_forward(x)
    jax.block_until_ready((code, quant, dequant))

    scale, prange = _init_form(x.reshape(-1).astype(jnp.float32))
    rc = ref_encode(x, scale, prange)
    assert jnp.allclose(code, rc, rtol=1e-5, atol=1e-5), "encode mismatch"
    assert jnp.array_equal(quant, jnp.round(code)), "quant != round(code)"
    rd = ref_decode(quant, scale, prange)
    assert jnp.allclose(dequant, rd, rtol=1e-5, atol=1e-5), "decode mismatch"

    # Reduced-output variant: halves HBM store traffic for dequant-only users.
    (dq_only,) = ms_t_forward(x, outputs=("dequant",))
    jax.block_until_ready(dq_only)
    assert jnp.array_equal(dq_only, dequant), "dequant-only variant mismatch"

    print("KERNEL_OK")
</pallas_src>

<mosaic_0001>
module attributes {stable_mosaic.version = 11 : i64} {
  func.func @kernel(%arg0: i32, %arg1: memref<28xf32, #tpu.memory_space<smem>>, %arg2: memref<8x128xf32, #tpu.memory_space<vmem>>, %arg3: memref<8x128xf32, #tpu.memory_space<vmem>>, %arg4: memref<8x128xf32, #tpu.memory_space<vmem>>, %arg5: memref<8x128xf32, #tpu.memory_space<vmem>>) attributes {dimension_semantics = [#tpu.dimension_semantics<parallel>], iteration_bounds = array<i64: 2>, scalar_prefetch = 0 : i64, scratch_operands = 0 : i64, tpu.core_type = #tpu.core_type<tc>, window_params = [{transform_indices = @transform_0, window_bounds = array<i64: 28>}, {transform_indices = @transform_1, window_bounds = array<i64: 8, 128>}, {transform_indices = @transform_2, window_bounds = array<i64: 8, 128>}, {transform_indices = @transform_3, window_bounds = array<i64: 8, 128>}, {transform_indices = @transform_4, window_bounds = array<i64: 8, 128>}]} {
    %c0 = arith.constant 0 : index
    %c0_0 = arith.constant 0 : index
    %0 = vector.load %arg2[%c0, %c0_0] : memref<8x128xf32, #tpu.memory_space<vmem>>, vector<8x128xf32>
    %1 = math.absf %0 : vector<8x128xf32>
    %cst = arith.constant 0.000000e+00 : f32
    %2 = vector.broadcast %cst : f32 to vector<8x128xf32>
    %3 = arith.cmpf olt, %0, %2 : vector<8x128xf32>
    %cst_1 = arith.constant -1.000000e+00 : f32
    %cst_2 = arith.constant 1.000000e+00 : f32
    %4 = vector.broadcast %cst_1 : f32 to vector<8x128xf32>
    %5 = vector.broadcast %cst_2 : f32 to vector<8x128xf32>
    %6 = arith.select %3, %4, %5 : vector<8x128xi1>, vector<8x128xf32>
    %c8 = arith.constant 8 : index
    %7 = memref.load %arg1[%c8] : memref<28xf32, #tpu.memory_space<smem>>
    %c13 = arith.constant 13 : index
    %8 = memref.load %arg1[%c13] : memref<28xf32, #tpu.memory_space<smem>>
    %c3 = arith.constant 3 : index
    %9 = memref.load %arg1[%c3] : memref<28xf32, #tpu.memory_space<smem>>
    %10 = vector.broadcast %9 : f32 to vector<8x128xf32>
    %11 = arith.cmpf olt, %1, %10 : vector<8x128xf32>
    %c7 = arith.constant 7 : index
    %12 = memref.load %arg1[%c7] : memref<28xf32, #tpu.memory_space<smem>>
    %13 = vector.broadcast %12 : f32 to vector<8x128xf32>
    %14 = vector.broadcast %7 : f32 to vector<8x128xf32>
    %15 = arith.select %11, %13, %14 : vector<8x128xi1>, vector<8x128xf32>
    %c12 = arith.constant 12 : index
    %16 = memref.load %arg1[%c12] : memref<28xf32, #tpu.memory_space<smem>>
    %17 = vector.broadcast %16 : f32 to vector<8x128xf32>
    %18 = vector.broadcast %8 : f32 to vector<8x128xf32>
    %19 = arith.select %11, %17, %18 : vector<8x128xi1>, vector<8x128xf32>
    %c2 = arith.constant 2 : index
    %20 = memref.load %arg1[%c2] : memref<28xf32, #tpu.memory_space<smem>>
    %21 = vector.broadcast %20 : f32 to vector<8x128xf32>
    %22 = arith.cmpf olt, %1, %21 : vector<8x128xf32>
    %c6 = arith.constant 6 : index
    %23 = memref.load %arg1[%c6] : memref<28xf32, #tpu.memory_space<smem>>
    %24 = vector.broadcast %23 : f32 to vector<8x128xf32>
    %25 = arith.select %22, %24, %15 : vector<8x128xi1>, vector<8x128xf32>
    %c11 = arith.constant 11 : index
    %26 = memref.load %arg1[%c11] : memref<28xf32, #tpu.memory_space<smem>>
    %27 = vector.broadcast %26 : f32 to vector<8x128xf32>
    %28 = arith.select %22, %27, %19 : vector<8x128xi1>, vector<8x128xf32>
    %c1 = arith.constant 1 : index
    %29 = memref.load %arg1[%c1] : memref<28xf32, #tpu.memory_space<smem>>
    %30 = vector.broadcast %29 : f32 to vector<8x128xf32>
    %31 = arith.cmpf olt, %1, %30 : vector<8x128xf32>
    %c5 = arith.constant 5 : index
    %32 = memref.load %arg1[%c5] : memref<28xf32, #tpu.memory_space<smem>>
    %33 = vector.broadcast %32 : f32 to vector<8x128xf32>
    %34 = arith.select %31, %33, %25 : vector<8x128xi1>, vector<8x128xf32>
    %c10 = arith.constant 10 : index
    %35 = memref.load %arg1[%c10] : memref<28xf32, #tpu.memory_space<smem>>
    %36 = vector.broadcast %35 : f32 to vector<8x128xf32>
    %37 = arith.select %31, %36, %28 : vector<8x128xi1>, vector<8x128xf32>
    %c0_3 = arith.constant 0 : index
    %38 = memref.load %arg1[%c0_3] : memref<28xf32, #tpu.memory_space<smem>>
    %39 = vector.broadcast %38 : f32 to vector<8x128xf32>
    %40 = arith.cmpf olt, %1, %39 : vector<8x128xf32>
    %c4 = arith.constant 4 : index
    %41 = memref.load %arg1[%c4] : memref<28xf32, #tpu.memory_space<smem>>
    %42 = vector.broadcast %41 : f32 to vector<8x128xf32>
    %43 = arith.select %40, %42, %34 : vector<8x128xi1>, vector<8x128xf32>
    %c9 = arith.constant 9 : index
    %44 = memref.load %arg1[%c9] : memref<28xf32, #tpu.memory_space<smem>>
    %45 = vector.broadcast %44 : f32 to vector<8x128xf32>
    %46 = arith.select %40, %45, %37 : vector<8x128xi1>, vector<8x128xf32>
    %47 = arith.mulf %1, %43 : vector<8x128xf32>
    %48 = arith.addf %47, %46 : vector<8x128xf32>
    %49 = arith.mulf %48, %6 : vector<8x128xf32>
    %c0_4 = arith.constant 0 : index
    %c0_5 = arith.constant 0 : index
    %50 = vector.load %arg3[%c0_4, %c0_5] : memref<8x128xf32, #tpu.memory_space<vmem>>, vector<8x128xf32>
    tpu.vector_store %arg3[%c0_4, %c0_5], %49 {strides = array<i32>} : memref<8x128xf32, #tpu.memory_space<vmem>>, vector<8x128xf32>,
    %51 = math.roundeven %48 : vector<8x128xf32>
    %52 = arith.mulf %51, %6 : vector<8x128xf32>
    %c0_6 = arith.constant 0 : index
    %c0_7 = arith.constant 0 : index
    %53 = vector.load %arg4[%c0_6, %c0_7] : memref<8x128xf32, #tpu.memory_space<vmem>>, vector<8x128xf32>
    tpu.vector_store %arg4[%c0_6, %c0_7], %52 {strides = array<i32>} : memref<8x128xf32, #tpu.memory_space<vmem>>, vector<8x128xf32>,
    %c22 = arith.constant 22 : index
    %54 = memref.load %arg1[%c22] : memref<28xf32, #tpu.memory_space<smem>>
    %c27 = arith.constant 27 : index
    %55 = memref.load %arg1[%c27] : memref<28xf32, #tpu.memory_space<smem>>
    %c17 = arith.constant 17 : index
    %56 = memref.load %arg1[%c17] : memref<28xf32, #tpu.memory_space<smem>>
    %57 = vector.broadcast %56 : f32 to vector<8x128xf32>
    %58 = arith.cmpf olt, %51, %57 : vector<8x128xf32>
    %c21 = arith.constant 21 : index
    %59 = memref.load %arg1[%c21] : memref<28xf32, #tpu.memory_space<smem>>
    %60 = vector.broadcast %59 : f32 to vector<8x128xf32>
    %61 = vector.broadcast %54 : f32 to vector<8x128xf32>
    %62 = arith.select %58, %60, %61 : vector<8x128xi1>, vector<8x128xf32>
    %c26 = arith.constant 26 : index
    %63 = memref.load %arg1[%c26] : memref<28xf32, #tpu.memory_space<smem>>
    %64 = vector.broadcast %63 : f32 to vector<8x128xf32>
    %65 = vector.broadcast %55 : f32 to vector<8x128xf32>
    %66 = arith.select %58, %64, %65 : vector<8x128xi1>, vector<8x128xf32>
    %c16 = arith.constant 16 : index
    %67 = memref.load %arg1[%c16] : memref<28xf32, #tpu.memory_space<smem>>
    %68 = vector.broadcast %67 : f32 to vector<8x128xf32>
    %69 = arith.cmpf olt, %51, %68 : vector<8x128xf32>
    %c20 = arith.constant 20 : index
    %70 = memref.load %arg1[%c20] : memref<28xf32, #tpu.memory_space<smem>>
    %71 = vector.broadcast %70 : f32 to vector<8x128xf32>
    %72 = arith.select %69, %71, %62 : vector<8x128xi1>, vector<8x128xf32>
    %c25 = arith.constant 25 : index
    %73 = memref.load %arg1[%c25] : memref<28xf32, #tpu.memory_space<smem>>
    %74 = vector.broadcast %73 : f32 to vector<8x128xf32>
    %75 = arith.select %69, %74, %66 : vector<8x128xi1>, vector<8x128xf32>
    %c15 = arith.constant 15 : index
    %76 = memref.load %arg1[%c15] : memref<28xf32, #tpu.memory_space<smem>>
    %77 = vector.broadcast %76 : f32 to vector<8x128xf32>
    %78 = arith.cmpf olt, %51, %77 : vector<8x128xf32>
    %c19 = arith.constant 19 : index
    %79 = memref.load %arg1[%c19] : memref<28xf32, #tpu.memory_space<smem>>
    %80 = vector.broadcast %79 : f32 to vector<8x128xf32>
    %81 = arith.select %78, %80, %72 : vector<8x128xi1>, vector<8x128xf32>
    %c24 = arith.constant 24 : index
    %82 = memref.load %arg1[%c24] : memref<28xf32, #tpu.memory_space<smem>>
    %83 = vector.broadcast %82 : f32 to vector<8x128xf32>
    %84 = arith.select %78, %83, %75 : vector<8x128xi1>, vector<8x128xf32>
    %c14 = arith.constant 14 : index
    %85 = memref.load %arg1[%c14] : memref<28xf32, #tpu.memory_space<smem>>
    %86 = vector.broadcast %85 : f32 to vector<8x128xf32>
    %87 = arith.cmpf olt, %51, %86 : vector<8x128xf32>
    %c18 = arith.constant 18 : index
    %88 = memref.load %arg1[%c18] : memref<28xf32, #tpu.memory_space<smem>>
    %89 = vector.broadcast %88 : f32 to vector<8x128xf32>
    %90 = arith.select %87, %89, %81 : vector<8x128xi1>, vector<8x128xf32>
    %c23 = arith.constant 23 : index
    %91 = memref.load %arg1[%c23] : memref<28xf32, #tpu.memory_space<smem>>
    %92 = vector.broadcast %91 : f32 to vector<8x128xf32>
    %93 = arith.select %87, %92, %84 : vector<8x128xi1>, vector<8x128xf32>
    %94 = arith.mulf %51, %90 : vector<8x128xf32>
    %95 = arith.addf %94, %93 : vector<8x128xf32>
    %96 = arith.mulf %95, %6 : vector<8x128xf32>
    %c0_8 = arith.constant 0 : index
    %c0_9 = arith.constant 0 : index
    %97 = vector.load %arg5[%c0_8, %c0_9] : memref<8x128xf32, #tpu.memory_space<vmem>>, vector<8x128xf32>
    tpu.vector_store %arg5[%c0_8, %c0_9], %96 {strides = array<i32>} : memref<8x128xf32, #tpu.memory_space<vmem>>, vector<8x128xf32>,
    return
  }
  func.func @transform_0(%arg0: i32) -> i32 {
    %c0_i32 = arith.constant 0 : i32
    %c0_i32_0 = arith.constant 0 : i32
    return %c0_i32 : i32
  }
  func.func @transform_1(%arg0: i32) -> (i32, i32) {
    %c0_i32 = arith.constant 0 : i32
    %c0_i32_0 = arith.constant 0 : i32
    return %arg0, %c0_i32 : i32, i32
  }
  func.func @transform_2(%arg0: i32) -> (i32, i32) {
    %c0_i32 = arith.constant 0 : i32
    %c0_i32_0 = arith.constant 0 : i32
    return %arg0, %c0_i32 : i32, i32
  }
  func.func @transform_3(%arg0: i32) -> (i32, i32) {
    %c0_i32 = arith.constant 0 : i32
    %c0_i32_0 = arith.constant 0 : i32
    return %arg0, %c0_i32 : i32, i32
  }
  func.func @transform_4(%arg0: i32) -> (i32, i32) {
    %c0_i32 = arith.constant 0 : i32
    %c0_i32_0 = arith.constant 0 : i32
    return %arg0, %c0_i32 : i32, i32
  }
}

</mosaic_0001>

<llo_original>
// kernel: ms_t_forward.1
$region0: #{ms_t_forward.1}
  #allocation0 [shape = 'u32[]', space=smem, size = 0x4, offset = 0x4, fixed_abs, tag = 'smem constant byte address 0x4 - core index']
  #allocation1 [shape = 'u32[144,128]{1,0:T(1,128)}', space=vmem, size = 0x12000, scoped, tag = 'internal scratch']
  %s0 = inlined_call_operand.vmem [shape: f32[28], index: 0, kind: input, shape index: {}]
  %s1 = inlined_call_operand.vmem [shape: f32[16,128], index: 1, kind: input, shape index: {}]
  %s2 = inlined_call_operand.vmem [shape: f32[16,128], index: 2, kind: output, shape index: {0}]
  %s3 = inlined_call_operand.vmem [shape: f32[16,128], index: 3, kind: output, shape index: {1}]
  %s4 = inlined_call_operand.vmem [shape: f32[16,128], index: 4, kind: output, shape index: {2}]
  %5 = xla_tuple %s2, %s3, %s4
  %s6 = sld [smem:[#allocation0]]
  $region61: #{ms_t_forward.1} parent=0
    _
  %s8 = ssub.s32 1, %s6
  %s9 = scalar_select 0, %s8, %s6
  $region1: #{ms_t_forward.1} parent=0
    #allocation2 [shape = 'u8[512]{0}', space=smem, size = 0x200, scoped, tag = 'input window, operand 0, single buffered']
    #allocation3 [shape = 's32[2]{0}', space=sflag, size = 0x8, scoped, tag = 'scoped memory for ms_t_forward.1']
    %10 = vsyncpa [#allocation3], 0
    loop: start=0, step=1, limit=4
    $region2: #{ms_t_forward.1} parent=1 // loop_pre_header
      _
    $region3: #{ms_t_forward.1} parent=1 // loop_header
      %s12 = sphi 0, %s16
      %p13 = scmp.ge.s32.totalorder %s12, 4
      %s20 = sphi 0, %s20
      %s22 = sphi 0, %s20
      %s23 = sphi 0, %s22
      %s37 = sphi 0, %s23
      %s43 = sphi 0, %s45
      %s46 = sphi 0, %s43
      %s47 = sphi 0, %s46
      %s63 = sphi 0, %s47
      %s69 = sphi 0, %s71
      %s72 = sphi 0, %s69
      %s73 = sphi 0, %s72
      %s89 = sphi 0, %s73
      %s95 = sphi 0, %s97
      %s98 = sphi 0, %s95
      %s99 = sphi 0, %s98
      %s115 = sphi 0, %s99
      %s121 = sphi 0, %s123
      %s124 = sphi 0, %s121
      %s125 = sphi 0, %s124
      %s141 = sphi 0, %s125
    $region4: #{ms_t_forward.1} parent=1 // loop_header_branch
      %15 = sbr.rel (%p13) target = $region8
    $region5: #{ms_t_forward.1} parent=1 // loop_body
      %s17 = ssub.s32 %s12, 1
      %s18 = ssub.s32 %s12, 2
      %s19 = sadd.s32 %s12, 1
      %s21 = sadd.s32 %s20, 1
      %p24 = scmp.eq.s32.totalorder %s12, 1
      %p25 = scmp.ne.s32.totalorder %s20, %s22
      %p26 = scmp.eq.s32.totalorder %s12, 0
      %p27 = por %p25, %p26
      %p28 = scmp.ne.s32.totalorder %s20, %s22
      %p29 = scmp.eq.s32.totalorder %s17, 1
      %p30 = por %p28, %p29
      %p31 = scmp.ne.s32.totalorder %s22, %s23
      %p32 = scmp.eq.s32.totalorder %s17, 0
      %p33 = por %p31, %p32
      %p34 = scmp.ne.s32.totalorder %s22, %s23
      %p35 = scmp.eq.s32.totalorder %s18, 1
      %p36 = por %p34, %p35
      %p38 = scmp.ne.s32.totalorder %s23, %s37
      %p39 = scmp.eq.s32.totalorder %s18, 0
      %p40 = por %p38, %p39
      %s41 = ssub.s32 %s12, %s19
      %p42 = scmp.eq.s32.totalorder %s41, 0
      %s44 = sadd.s32 %s43, 1
      %s45 = scalar_select %p42, %s43, %s44
      %p48 = pneg %p42
      %p49 = scmp.eq.s32.totalorder %s12, 1
      %p50 = por %p48, %p49
      %p51 = scmp.ne.s32.totalorder %s43, %s46
      %p52 = scmp.eq.s32.totalorder %s12, 0
      %p53 = por %p51, %p52
      %p54 = scmp.ne.s32.totalorder %s43, %s46
      %p55 = scmp.eq.s32.totalorder %s17, 1
      %p56 = por %p54, %p55
      %p57 = scmp.ne.s32.totalorder %s46, %s47
      %p58 = scmp.eq.s32.totalorder %s17, 0
      %p59 = por %p57, %p58
      %p60 = scmp.ne.s32.totalorder %s46, %s47
      %p61 = scmp.eq.s32.totalorder %s18, 1
      %p62 = por %p60, %p61
      %p64 = scmp.ne.s32.totalorder %s47, %s63
      %p65 = scmp.eq.s32.totalorder %s18, 0
      %p66 = por %p64, %p65
      %s67 = ssub.s32 %s12, %s19
      %p68 = scmp.eq.s32.totalorder %s67, 0
      %s70 = sadd.s32 %s69, 1
      %s71 = scalar_select %p68, %s69, %s70
      %p74 = pneg %p68
      %p75 = scmp.eq.s32.totalorder %s12, 1
      %p76 = por %p74, %p75
      %p77 = scmp.ne.s32.totalorder %s69, %s72
      %p78 = scmp.eq.s32.totalorder %s12, 0
      %p79 = por %p77, %p78
      %p80 = scmp.ne.s32.totalorder %s69, %s72
      %p81 = scmp.eq.s32.totalorder %s17, 1
      %p82 = por %p80, %p81
      %p83 = scmp.ne.s32.totalorder %s72, %s73
      %p84 = scmp.eq.s32.totalorder %s17, 0
      %p85 = por %p83, %p84
      %p86 = scmp.ne.s32.totalorder %s72, %s73
      %p87 = scmp.eq.s32.totalorder %s18, 1
      %p88 = por %p86, %p87
      %p90 = scmp.ne.s32.totalorder %s73, %s89
      %p91 = scmp.eq.s32.totalorder %s18, 0
      %p92 = por %p90, %p91
      %s93 = ssub.s32 %s12, %s19
      %p94 = scmp.eq.s32.totalorder %s93, 0
      %s96 = sadd.s32 %s95, 1
      %s97 = scalar_select %p94, %s95, %s96
      %p100 = pneg %p94
      %p101 = scmp.eq.s32.totalorder %s12, 1
      %p102 = por %p100, %p101
      %p103 = scmp.ne.s32.totalorder %s95, %s98
      %p104 = scmp.eq.s32.totalorder %s12, 0
      %p105 = por %p103, %p104
      %p106 = scmp.ne.s32.totalorder %s95, %s98
      %p107 = scmp.eq.s32.totalorder %s17, 1
      %p108 = por %p106, %p107
      %p109 = scmp.ne.s32.totalorder %s98, %s99
      %p110 = scmp.eq.s32.totalorder %s17, 0
      %p111 = por %p109, %p110
      %p112 = scmp.ne.s32.totalorder %s98, %s99
      %p113 = scmp.eq.s32.totalorder %s18, 1
      %p114 = por %p112, %p113
      %p116 = scmp.ne.s32.totalorder %s99, %s115
      %p117 = scmp.eq.s32.totalorder %s18, 0
      %p118 = por %p116, %p117
      %s119 = ssub.s32 %s12, %s19
      %p120 = scmp.eq.s32.totalorder %s119, 0
      %s122 = sadd.s32 %s121, 1
      %s123 = scalar_select %p120, %s121, %s122
      %p126 = pneg %p120
      %p127 = scmp.eq.s32.totalorder %s12, 1
      %p128 = por %p126, %p127
      %p129 = scmp.ne.s32.totalorder %s121, %s124
      %p130 = scmp.eq.s32.totalorder %s12, 0
      %p131 = por %p129, %p130
      %p132 = scmp.ne.s32.totalorder %s121, %s124
      %p133 = scmp.eq.s32.totalorder %s17, 1
      %p134 = por %p132, %p133
      %p135 = scmp.ne.s32.totalorder %s124, %s125
      %p136 = scmp.eq.s32.totalorder %s17, 0
      %p137 = por %p135, %p136
      %p138 = scmp.ne.s32.totalorder %s124, %s125
      %p139 = scmp.eq.s32.totalorder %s18, 1
      %p140 = por %p138, %p139
      %p142 = scmp.ne.s32.totalorder %s125, %s141
      %p143 = scmp.eq.s32.totalorder %s18, 0
      %p144 = por %p142, %p143
      %p145 = scmp.le.s32.totalorder 1, %s12
      %p146 = scmp.lt.s32.totalorder %s12, 3
      %p147 = pnand %p145, %p146
      %p148 = pneg %p147
      // Predicated region
      $region9: #{ms_t_forward.1} parent=5 // pred_check
        _
      $region10: #{ms_t_forward.1} parent=5 // pred_check_branch
        %150 = sbr.rel (%p147) target = $region12
      $region11: #{ms_t_forward.1} parent=5 // pred_region
        %s151 = ssub.s32 %s12, 1
        // Predicated region
        $region13: #{ms_t_forward.1} parent=11 // pred_check
          %p152 = pneg %p33
        $region14: #{ms_t_forward.1} parent=11 // pred_check_branch
          %154 = sbr.rel (%p152) target = $region16
        $region15: #{ms_t_forward.1} parent=11 // pred_region
          %s156 = ssub.s32 16, 16
          %157 = vsyncadd [#allocation3], %s156
          %s159 = sshll.u32 %s0, 4
          %s160 = int_to_ptr.vmem [resolvable:$true] %s159
          %162 = dma.vmem_to_smem %s160, 16, [#allocation2], [#allocation3]
        $region16: #{ms_t_forward.1} parent=11 // pred_fallthru
          _
      $region12: #{ms_t_forward.1} parent=5 // pred_fallthru
        _
      %p163 = scmp.lt.s32.totalorder %s12, 2
      // Predicated region
      $region17: #{ms_t_forward.1} parent=5 // pred_check
        %p164 = pneg %p163
      $region18: #{ms_t_forward.1} parent=5 // pred_check_branch
        %166 = sbr.rel (%p164) target = $region20
      $region19: #{ms_t_forward.1} parent=5 // pred_region
        // Predicated region
        $region21: #{ms_t_forward.1} parent=19 // pred_check
          %p167 = pneg %p53
        $region22: #{ms_t_forward.1} parent=19 // pred_check_branch
          %169 = sbr.rel (%p167) target = $region24
        $region23: #{ms_t_forward.1} parent=19 // pred_region
          %p170 = scmp.lt.s32.totalorder %s12, 1
          %s171 = scalar_select %p170, %s12, 1
          %s172 = smul.addr %s171, 8
          %s173 = scalar_lea.vmem %s1, %s172
        $region24: #{ms_t_forward.1} parent=19 // pred_fallthru
          _
      $region20: #{ms_t_forward.1} parent=5 // pred_fallthru
        _
      %p174 = scmp.le.s32.totalorder 1, %s12
      %p175 = scmp.lt.s32.totalorder %s12, 3
      %p176 = pnand %p174, %p175
      %p177 = pneg %p176
      // Predicated region
      $region25: #{ms_t_forward.1} parent=5 // pred_check
        _
      $region26: #{ms_t_forward.1} parent=5 // pred_check_branch
        %179 = sbr.rel (%p176) target = $region28
      $region27: #{ms_t_forward.1} parent=5 // pred_region
        %s180 = ssub.s32 %s12, 1
        // Predicated region
        $region29: #{ms_t_forward.1} parent=27 // pred_check
          %p181 = pneg %p33
        $region30: #{ms_t_forward.1} parent=27 // pred_check_branch
          %183 = sbr.rel (%p181) target = $region32
        $region31: #{ms_t_forward.1} parent=27 // pred_region
          %184 = dma.done [#allocation3], 16
        $region32: #{ms_t_forward.1} parent=27 // pred_fallthru
          _
        %185 = sfence
        %p186 = pneg %p33
        %p187 = pneg %p30
        %p188 = scmp.lt.s32.totalorder %s17, 1
        %s189 = scalar_select %p188, %s17, 1
        %s190 = smul.addr %s189, 8
        %s191 = scalar_lea.vmem %s1, %s190
        %p192 = pneg %p59
        %p193 = pneg %p56
        %p194 = pneg %p85
        %p195 = pneg %p82
        %p196 = scmp.lt.s32.totalorder %s17, 1
        %s197 = scalar_select %p196, %s17, 1
        %s198 = smul.addr %s197, 8
        %s199 = scalar_lea.vmem %s2, %s198
        %p200 = pneg %p111
        %p201 = pneg %p108
        %p202 = scmp.lt.s32.totalorder %s17, 1
        %s203 = scalar_select %p202, %s17, 1
        %s204 = smul.addr %s203, 8
        %s205 = scalar_lea.vmem %s3, %s204
        %p206 = pneg %p137
        %p207 = pneg %p134
        %p208 = scmp.lt.s32.totalorder %s17, 1
        %s209 = scalar_select %p208, %s17, 1
        %s210 = smul.addr %s209, 8
        %s211 = scalar_lea.vmem %s4, %s210
        %p212 = scmp.lt.s32.totalorder %s17, 1
        %s213 = scalar_select %p212, %s17, 1
        %s214 = smul.addr %s213, 8
        %s215 = scalar_lea.vmem %s1, %s214
        %p216 = scmp.lt.s32.totalorder %s17, 1
        %s217 = scalar_select %p216, %s17, 1
        %s218 = smul.addr %s217, 8
        %s219 = scalar_lea.vmem %s2, %s218
        %p220 = scmp.lt.s32.totalorder %s17, 1
        %s221 = scalar_select %p220, %s17, 1
        %s222 = smul.addr %s221, 8
        %s223 = scalar_lea.vmem %s3, %s222
        %p224 = scmp.lt.s32.totalorder %s17, 1
        %s225 = scalar_select %p224, %s17, 1
        %s226 = smul.addr %s225, 8
        %s227 = scalar_lea.vmem %s4, %s226
        %v228 = vld [vmem:[%s215] sm:$0xff]
        %v229 = vand.u32 2147483647, %v228
        %vm230 = vcmp.lt.f32.partialorder %v228, 0.0
        %v231 = vsel %vm230, -1.0, 1.0
        %s232 = sld [smem:[#allocation2 + $0x8]]
        %s233 = sld [smem:[#allocation2 + $0xd]]
        %s234 = sld [smem:[#allocation2 + $0x3]]
        %v235 = vstv %s234
        %vm236 = vcmp.lt.f32.partialorder %v229, %v235
        %s237 = sld [smem:[#allocation2 + $0x7]]
        %v238 = vstv %s237
        %v239 = vstv %s232
        %v240 = vsel %vm236, %v238, %v239
        %s241 = sld [smem:[#allocation2 + $0xc]]
        %v242 = vstv %s241
        %v243 = vstv %s233
        %v244 = vsel %vm236, %v242, %v243
        %s245 = sld [smem:[#allocation2 + $0x2]]
        %v246 = vstv %s245
        %vm247 = vcmp.lt.f32.partialorder %v229, %v246
        %s248 = sld [smem:[#allocation2 + $0x6]]
        %v249 = vstv %s248
        %v250 = vsel %vm247, %v249, %v240
        %s251 = sld [smem:[#allocation2 + $0xb]]
        %v252 = vstv %s251
        %v253 = vsel %vm247, %v252, %v244
        %s254 = sld [smem:[#allocation2 + $0x1]]
        %v255 = vstv %s254
        %vm256 = vcmp.lt.f32.partialorder %v229, %v255
        %s257 = sld [smem:[#allocation2 + $0x5]]
        %v258 = vstv %s257
        %v259 = vsel %vm256, %v258, %v250
        %s260 = sld [smem:[#allocation2 + $0xa]]
        %v261 = vstv %s260
        %v262 = vsel %vm256, %v261, %v253
        %s263 = sld [smem:[#allocation2]]
        %v264 = vstv %s263
        %vm265 = vcmp.lt.f32.partialorder %v229, %v264
        %s266 = sld [smem:[#allocation2 + $0x4]]
        %v267 = vstv %s266
        %v268 = vsel %vm265, %v267, %v259
        %s269 = sld [smem:[#allocation2 + $0x9]]
        %v270 = vstv %s269
        %v271 = vsel %vm265, %v270, %v262
        %v272 = vmul.f32 %v229, %v268
        %v273 = vadd.f32 %v272, %v271
        %v274 = vmul.f32 %v273, %v231
        %275 = vst [vmem:[%s219] sm:$0xff] %v274
        %v276 = vround.ne.pseudo %v273
        %v277 = vmul.f32 %v276, %v231
        %278 = vst [vmem:[%s223] sm:$0xff] %v277
        %s279 = sld [smem:[#allocation2 + $0x16]]
        %s280 = sld [smem:[#allocation2 + $0x1b]]
        %s281 = sld [smem:[#allocation2 + $0x11]]
        %v282 = vstv %s281
        %vm283 = vcmp.lt.f32.partialorder %v276, %v282
        %s284 = sld [smem:[#allocation2 + $0x15]]
        %v285 = vstv %s284
        %v286 = vstv %s279
        %v287 = vsel %vm283, %v285, %v286
        %s288 = sld [smem:[#allocation2 + $0x1a]]
        %v289 = vstv %s288
        %v290 = vstv %s280
        %v291 = vsel %vm283, %v289, %v290
        %s292 = sld [smem:[#allocation2 + $0x10]]
        %v293 = vstv %s292
        %vm294 = vcmp.lt.f32.partialorder %v276, %v293
        %s295 = sld [smem:[#allocation2 + $0x14]]
        %v296 = vstv %s295
        %v297 = vsel %vm294, %v296, %v287
        %s298 = sld [smem:[#allocation2 + $0x19]]
        %v299 = vstv %s298
        %v300 = vsel %vm294, %v299, %v291
        %s301 = sld [smem:[#allocation2 + $0xf]]
        %v302 = vstv %s301
        %vm303 = vcmp.lt.f32.partialorder %v276, %v302
        %s304 = sld [smem:[#allocation2 + $0x13]]
        %v305 = vstv %s304
        %v306 = vsel %vm303, %v305, %v297
        %s307 = sld [smem:[#allocation2 + $0x18]]
        %v308 = vstv %s307
        %v309 = vsel %vm303, %v308, %v300
        %s310 = sld [smem:[#allocation2 + $0xe]]
        %v311 = vstv %s310
        %vm312 = vcmp.lt.f32.partialorder %v276, %v311
        %s313 = sld [smem:[#allocation2 + $0x12]]
        %v314 = vstv %s313
        %v315 = vsel %vm312, %v314, %v306
        %s316 = sld [smem:[#allocation2 + $0x17]]
        %v317 = vstv %s316
        %v318 = vsel %vm312, %v317, %v309
        %v319 = vmul.f32 %v276, %v315
        %v320 = vadd.f32 %v319, %v318
        %v321 = vmul.f32 %v320, %v231
        %322 = vst [vmem:[%s227] sm:$0xff] %v321
        %p323 = scmp.lt.s32.totalorder %s17, 1
        %s324 = scalar_select %p323, %s17, 1
        %s325 = smul.addr %s324, 8
        %s326 = scalar_lea.vmem %s2, %s325
        %p327 = scmp.lt.s32.totalorder %s17, 1
        %s328 = scalar_select %p327, %s17, 1
        %s329 = smul.addr %s328, 8
        %s330 = scalar_lea.vmem %s3, %s329
        %p331 = scmp.lt.s32.totalorder %s17, 1
        %s332 = scalar_select %p331, %s17, 1
        %s333 = smul.addr %s332, 8
        %s334 = scalar_lea.vmem %s4, %s333
        // Predicated region
        $region33: #{ms_t_forward.1} parent=27 // pred_check
          %p335 = pneg %p82
        $region34: #{ms_t_forward.1} parent=27 // pred_check_branch
          %337 = sbr.rel (%p335) target = $region36
        $region35: #{ms_t_forward.1} parent=27 // pred_region
          _
        $region36: #{ms_t_forward.1} parent=27 // pred_fallthru
          _
        // Predicated region
        $region37: #{ms_t_forward.1} parent=27 // pred_check
          %p338 = pneg %p108
        $region38: #{ms_t_forward.1} parent=27 // pred_check_branch
          %340 = sbr.rel (%p338) target = $region40
        $region39: #{ms_t_forward.1} parent=27 // pred_region
          _
        $region40: #{ms_t_forward.1} parent=27 // pred_fallthru
          _
        // Predicated region
        $region41: #{ms_t_forward.1} parent=27 // pred_check
          %p341 = pneg %p134
        $region42: #{ms_t_forward.1} parent=27 // pred_check_branch
          %343 = sbr.rel (%p341) target = $region44
        $region43: #{ms_t_forward.1} parent=27 // pred_region
          _
        $region44: #{ms_t_forward.1} parent=27 // pred_fallthru
          _
      $region28: #{ms_t_forward.1} parent=5 // pred_fallthru
        _
      %p344 = scmp.le.s32.totalorder 2, %s12
      // Predicated region
      $region45: #{ms_t_forward.1} parent=5 // pred_check
        %p345 = pneg %p344
      $region46: #{ms_t_forward.1} parent=5 // pred_check_branch
        %347 = sbr.rel (%p345) target = $region48
      $region47: #{ms_t_forward.1} parent=5 // pred_region
        %s348 = ssub.s32 %s12, 2
        // Predicated region
        $region49: #{ms_t_forward.1} parent=47 // pred_check
          %p349 = pneg %p88
        $region50: #{ms_t_forward.1} parent=47 // pred_check_branch
          %351 = sbr.rel (%p349) target = $region52
        $region51: #{ms_t_forward.1} parent=47 // pred_region
          %p352 = scmp.lt.s32.totalorder %s18, 1
          %s353 = scalar_select %p352, %s18, 1
          %s354 = smul.addr %s353, 8
          %s355 = scalar_lea.vmem %s2, %s354
        $region52: #{ms_t_forward.1} parent=47 // pred_fallthru
          _
        // Predicated region
        $region53: #{ms_t_forward.1} parent=47 // pred_check
          %p356 = pneg %p114
        $region54: #{ms_t_forward.1} parent=47 // pred_check_branch
          %358 = sbr.rel (%p356) target = $region56
        $region55: #{ms_t_forward.1} parent=47 // pred_region
          %p359 = scmp.lt.s32.totalorder %s18, 1
          %s360 = scalar_select %p359, %s18, 1
          %s361 = smul.addr %s360, 8
          %s362 = scalar_lea.vmem %s3, %s361
        $region56: #{ms_t_forward.1} parent=47 // pred_fallthru
          _
        // Predicated region
        $region57: #{ms_t_forward.1} parent=47 // pred_check
          %p363 = pneg %p140
        $region58: #{ms_t_forward.1} parent=47 // pred_check_branch
          %365 = sbr.rel (%p363) target = $region60
        $region59: #{ms_t_forward.1} parent=47 // pred_region
          %p366 = scmp.lt.s32.totalorder %s18, 1
          %s367 = scalar_select %p366, %s18, 1
          %s368 = smul.addr %s367, 8
          %s369 = scalar_lea.vmem %s4, %s368
        $region60: #{ms_t_forward.1} parent=47 // pred_fallthru
          _
      $region48: #{ms_t_forward.1} parent=5 // pred_fallthru
        _
    $region6: #{ms_t_forward.1} parent=1 // loop_footer
      %s16 = sadd.s32 1, %s12
    $region7: #{ms_t_forward.1} parent=1 // loop_footer_branch
      %11 = sbr.rel target = $region3
    $region8: #{ms_t_forward.1} parent=1 // loop_exit
      _
    %370 = vsyncpa [#allocation3], 1
    %s371 = scalar_lea.sflag [#allocation3], 1
    %372 = vsyncpa %s371, 1

</llo_original>
